<compile_context>
chip_gen: v7x
topology: tpu7x:2x2x1
jax: 0.10.0
libtpu: 0.0.40
codegen_flags: <defaults>
</compile_context>

<pallas_src>
from functools import partial

import jax
import jax.numpy as jnp
from jax.experimental import pallas as pl
from jax.experimental.pallas import tpu as pltpu


_NEG_BIG = jnp.float32(-9.0e15)   # matches -9000000000000000.0 in the reference


def _round_up(v, m):
    return (v + m - 1) // m * m


def _gat_layer_kernel(alpha, tile_q, h_ref, bias_ref, a1_ref, a2_ref, out_ref):
    """One query-row tile of GraphAttentionLayer forward (concat=False)."""
    i = pl.program_id(0)

    h = h_ref[...]                        # (Np, Fp) f32, all (padded) nodes
    a1 = a1_ref[...]                      # (1, Fp)
    a2 = a2_ref[...]                      # (1, Fp)

    q0 = pl.multiple_of(i * tile_q, tile_q)
    h_q = h_ref[pl.ds(q0, tile_q), :]     # (TQ, Fp) query rows of this tile

    # wh1 = h_q @ a[:F] -> (TQ, 1): VPU multiply + lane reduce (no MXU push).
    wh1 = jnp.sum(h_q * a1, axis=-1, keepdims=True)

    # wh2^T = (h @ a[F:])^T -> (1, Np): one MXU push with lane-dense output.
    wh2_t = jax.lax.dot_general(
        a2, h, (((1,), (1,)), ((), ())), preferred_element_type=jnp.float32
    )

    e = wh1 + wh2_t                       # (TQ, Np) broadcast add
    e = jnp.where(e > 0, e, alpha * e)    # LeakyReLU(negative_slope=alpha)

    # Adjacency mask folded into an additive bias (0 where adj>0 else -9e15);
    # bit-identical to the reference select in f32 since |e| << 9e15.
    att = e + bias_ref[...]

    # Row softmax (dim=1): exp + approximate reciprocal (EUP) instead of divide.
    att = jnp.exp(att - jnp.max(att, axis=-1, keepdims=True))
    denom = jnp.sum(att, axis=-1, keepdims=True)
    att = att * pl.reciprocal(denom, approx=True)

    # h' = attention @ h -> (TQ, Fp).  (Kept f32 to stay numerically faithful;
    # on v6e with large N one could cast att/h to bf16 here with f32 accumulate.)
    out_ref[...] = jnp.dot(att, h, preferred_element_type=jnp.float32).astype(
        out_ref.dtype
    )


def gat_attention_layer(h, adj, a, alpha, *, tile_q=128):
    """Pallas call for GraphAttentionLayer(h, adj) with parameter a (2F, 1)."""
    N, F = h.shape
    Np = _round_up(N, 128)
    Fp = _round_up(F, 128)
    TQ = min(tile_q, Np)

    # Lane-dense zero padding; padded nodes have zero features and are fully
    # masked by the additive bias, so real rows/cols match the unpadded math.
    h_p = jnp.zeros((Np, Fp), jnp.float32).at[:N, :F].set(h.astype(jnp.float32))
    adj_p = jnp.zeros((Np, Np), jnp.float32).at[:N, :N].set(adj.astype(jnp.float32))
    bias = jnp.where(adj_p > 0, jnp.float32(0.0), _NEG_BIG)
    a1 = jnp.zeros((1, Fp), jnp.float32).at[0, :F].set(a[:F, 0].astype(jnp.float32))
    a2 = jnp.zeros((1, Fp), jnp.float32).at[0, :F].set(a[F:, 0].astype(jnp.float32))

    grid = (Np // TQ,)

    flops = 2 * Np * Np * Fp + 4 * Np * Fp + 7 * Np * Np
    transcendentals = Np * Np + Np
    bytes_accessed = 4 * (2 * Np * Fp + Np * Np + 2 * Fp)

    # h resident + double-buffered bias/out tiles + a rows + intermediates.
    vmem_est = 4 * (2 * Np * Fp + 2 * TQ * Np + 2 * TQ * Fp + 4 * Fp) + 16 * TQ * Np
    vmem_limit = int(min(max(2 * vmem_est, 32 * 1024 * 1024), 64 * 1024 * 1024))

    kernel = partial(_gat_layer_kernel, float(alpha), TQ)
    out_p = pl.pallas_call(
        kernel,
        out_shape=jax.ShapeDtypeStruct((Np, Fp), jnp.float32),
        grid=grid,
        in_specs=[
            pl.BlockSpec((Np, Fp), lambda i: (0, 0)),   # h: all nodes, resident
            pl.BlockSpec((TQ, Np), lambda i: (i, 0)),   # additive mask bias tile
            pl.BlockSpec((1, Fp), lambda i: (0, 0)),    # a1 row (lane-dense)
            pl.BlockSpec((1, Fp), lambda i: (0, 0)),    # a2 row (lane-dense)
        ],
        out_specs=pl.BlockSpec((TQ, Fp), lambda i: (i, 0)),
        compiler_params=pltpu.CompilerParams(
            dimension_semantics=("parallel",),
            vmem_limit_bytes=vmem_limit,
        ),
        cost_estimate=pl.CostEstimate(
            flops=flops,
            transcendentals=transcendentals,
            bytes_accessed=bytes_accessed,
        ),
    )(h_p, bias, a1, a2)

    return out_p[:N, :F].astype(h.dtype)


def gat_attention_layer_ref(h, adj, a, alpha):
    """Pure-JAX reference of the PyTorch GraphAttentionLayer.forward."""
    F = h.shape[1]
    wh1 = h @ a[:F, :]
    wh2 = h @ a[F:, :]
    e = wh1 + wh2.T
    e = jnp.where(e > 0, e, alpha * e)
    att = jnp.where(adj > 0, e, _NEG_BIG)
    att = jax.nn.softmax(att, axis=1)
    return att @ h


def init_gat_params(key, nfeat, nhid):
    """Deterministic init mirroring the PyTorch __init__ shapes."""
    k0, k1, k2, k3 = jax.random.split(key, 4)

    def xavier_uniform(k, shape, gain):
        fan_in, fan_out = shape
        bound = gain * jnp.sqrt(6.0 / (fan_in + fan_out))
        return jax.random.uniform(k, shape, jnp.float32, -bound, bound)

    return {
        # attentions[0]: GraphAttentionLayer(nfeat, nfeat)
        "att0_W": xavier_uniform(k0, (nfeat, nfeat), 1.414),   # unused in forward
        "att0_a": 0.1 * jax.random.normal(k1, (2 * nfeat, 1), jnp.float32),
        # out_att: GraphAttentionLayer(nfeat, nhid)  (never called in forward)
        "out_W": xavier_uniform(k2, (nfeat, nhid), 1.414),
        "out_a": 0.1 * jax.random.normal(k3, (2 * nhid, 1), jnp.float32),
    }


@partial(jax.jit, static_argnames=("alpha",))
def gat_forward(x, adj, params, alpha=0.2):
    # x = stack([att(x, adj) for att in attentions], dim=0).squeeze(0)
    att_out = gat_attention_layer(x, adj, params["att0_a"], alpha)
    att_out = jnp.stack([att_out], axis=0)[0]
    # return mean(stack(all_embeds, dim=0), dim=0) with all_embeds == [x]
    result = jnp.mean(jnp.stack([x], axis=0), axis=0)
    return result, att_out


if __name__ == "__main__":
    N = 16        # number of graph nodes
    NFEAT = 32    # node feature dim
    NHID = 16
    ALPHA = 0.2

    key = jax.random.PRNGKey(0)
    kx, kadj, kp = jax.random.split(key, 3)

    x = jax.random.normal(kx, (N, NFEAT), jnp.float32)
    adj = (jax.random.uniform(kadj, (N, N)) > 0.5).astype(jnp.float32)
    adj = adj + jnp.eye(N, dtype=jnp.float32)  # self loops so no row is empty

    params = init_gat_params(kp, NFEAT, NHID)

    result, att_out = gat_forward(x, adj, params, alpha=ALPHA)
    jax.block_until_ready((result, att_out))

    # The module's output is exactly its input (attention branch is discarded).
    assert jnp.allclose(result, x), "GAT forward output should equal input x"
    assert att_out.shape == (N, NFEAT)
    assert bool(jnp.all(jnp.isfinite(att_out)))

    # Validate the attention branch against a pure-JAX reference (loose tol due
    # to the approximate reciprocal in the kernel's softmax).
    att_ref = gat_attention_layer_ref(x, adj, params["att0_a"], ALPHA)
    assert jnp.allclose(att_out, att_ref, rtol=2e-2, atol=2e-2), "attention mismatch"

    print("KERNEL_OK")
</pallas_src>

<mosaic_0001>
module attributes {stable_mosaic.version = 11 : i64} {
  func.func @_gat_layer_kernel(%arg0: i32, %arg1: memref<128x128xf32, #tpu.memory_space<vmem>>, %arg2: memref<128x128xf32, #tpu.memory_space<vmem>>, %arg3: memref<1x128xf32, #tpu.memory_space<vmem>>, %arg4: memref<1x128xf32, #tpu.memory_space<vmem>>, %arg5: memref<128x128xf32, #tpu.memory_space<vmem>>) attributes {dimension_semantics = [#tpu.dimension_semantics<parallel>], iteration_bounds = array<i64: 1>, scalar_prefetch = 0 : i64, scratch_operands = 0 : i64, tpu.core_type = #tpu.core_type<tc>, window_params = [{pipeline_mode = #tpu.pipeline_mode<synchronous>, transform_indices = @transform_0, window_bounds = array<i64: 128, 128>}, {transform_indices = @transform_1, window_bounds = array<i64: 128, 128>}, {pipeline_mode = #tpu.pipeline_mode<synchronous>, transform_indices = @transform_2, window_bounds = array<i64: 1, 128>}, {pipeline_mode = #tpu.pipeline_mode<synchronous>, transform_indices = @transform_3, window_bounds = array<i64: 1, 128>}, {transform_indices = @transform_4, window_bounds = array<i64: 128, 128>}]} {
    %c0 = arith.constant 0 : index
    %c0_0 = arith.constant 0 : index
    %0 = vector.load %arg1[%c0, %c0_0] : memref<128x128xf32, #tpu.memory_space<vmem>>, vector<128x128xf32>
    %c0_1 = arith.constant 0 : index
    %c0_2 = arith.constant 0 : index
    %1 = vector.load %arg3[%c0_1, %c0_2] : memref<1x128xf32, #tpu.memory_space<vmem>>, vector<1x128xf32>
    %c0_3 = arith.constant 0 : index
    %c0_4 = arith.constant 0 : index
    %2 = vector.load %arg4[%c0_3, %c0_4] : memref<1x128xf32, #tpu.memory_space<vmem>>, vector<1x128xf32>
    %c128_i32 = arith.constant 128 : i32
    %3 = arith.muli %arg0, %c128_i32 : i32
    %4 = tpu.assume_multiple %3, 128 : i32
    %5 = arith.index_cast %4 : i32 to index
    %c0_5 = arith.constant 0 : index
    %6 = vector.load %arg1[%5, %c0_5] : memref<128x128xf32, #tpu.memory_space<vmem>>, vector<128x128xf32>
    %7 = vector.broadcast %1 : vector<1x128xf32> to vector<128x128xf32>
    %8 = arith.mulf %6, %7 : vector<128x128xf32>
    %cst = arith.constant dense<0.000000e+00> : vector<128xf32>
    %9 = vector.multi_reduction <add>, %8, %cst [1] : vector<128x128xf32> to vector<128xf32>
    %10 = vector.shape_cast %9 : vector<128xf32> to vector<128x1xf32>
    %cst_6 = arith.constant dense<0.000000e+00> : vector<1x128xf32>
    %11 = tpu.matmul %2, %0, %cst_6 {dimension_numbers = #tpu.dot_dimension_numbers<[1], [1], [0], [0], [0, 0, 1, 0], [], []>} : vector<1x128xf32>, vector<128x128xf32>, vector<1x128xf32> -> vector<1x128xf32>
    %12 = vector.broadcast %10 : vector<128x1xf32> to vector<128x128xf32>
    %13 = vector.broadcast %11 : vector<1x128xf32> to vector<128x128xf32>
    %14 = arith.addf %12, %13 : vector<128x128xf32>
    %cst_7 = arith.constant 0.000000e+00 : f32
    %15 = vector.broadcast %cst_7 : f32 to vector<128x128xf32>
    %16 = arith.cmpf ogt, %14, %15 : vector<128x128xf32>
    %cst_8 = arith.constant 2.000000e-01 : f32
    %17 = vector.broadcast %cst_8 : f32 to vector<128x128xf32>
    %18 = arith.mulf %17, %14 : vector<128x128xf32>
    %19 = arith.select %16, %14, %18 : vector<128x128xi1>, vector<128x128xf32>
    %c0_9 = arith.constant 0 : index
    %c0_10 = arith.constant 0 : index
    %20 = vector.load %arg2[%c0_9, %c0_10] : memref<128x128xf32, #tpu.memory_space<vmem>>, vector<128x128xf32>
    %21 = arith.addf %19, %20 : vector<128x128xf32>
    %cst_11 = arith.constant dense<0xFF800000> : vector<128xf32>
    %22 = vector.multi_reduction <maximumf>, %21, %cst_11 [1] : vector<128x128xf32> to vector<128xf32>
    %23 = vector.shape_cast %22 : vector<128xf32> to vector<128x1xf32>
    %24 = vector.broadcast %23 : vector<128x1xf32> to vector<128x128xf32>
    %25 = arith.subf %21, %24 : vector<128x128xf32>
    %26 = math.exp %25 : vector<128x128xf32>
    %cst_12 = arith.constant dense<0.000000e+00> : vector<128xf32>
    %27 = vector.multi_reduction <add>, %26, %cst_12 [1] : vector<128x128xf32> to vector<128xf32>
    %28 = vector.shape_cast %27 : vector<128xf32> to vector<128x1xf32>
    %29 = tpu.reciprocal %28 {approx = true} : vector<128x1xf32> -> vector<128x1xf32>
    %30 = vector.broadcast %29 : vector<128x1xf32> to vector<128x128xf32>
    %31 = arith.mulf %26, %30 : vector<128x128xf32>
    %cst_13 = arith.constant dense<0.000000e+00> : vector<128x128xf32>
    %32 = tpu.matmul %31, %0, %cst_13 {dimension_numbers = #tpu.dot_dimension_numbers<[1], [0], [0], [1], [0, 0, 1, 1], [], []>} : vector<128x128xf32>, vector<128x128xf32>, vector<128x128xf32> -> vector<128x128xf32>
    %c0_14 = arith.constant 0 : index
    %c0_15 = arith.constant 0 : index
    %33 = vector.load %arg5[%c0_14, %c0_15] : memref<128x128xf32, #tpu.memory_space<vmem>>, vector<128x128xf32>
    tpu.vector_store %arg5[%c0_14, %c0_15], %32 {strides = array<i32>} : memref<128x128xf32, #tpu.memory_space<vmem>>, vector<128x128xf32>,
    return
  }
  func.func @transform_0(%arg0: i32) -> (i32, i32) {
    %c0_i32 = arith.constant 0 : i32
    %c0_i32_0 = arith.constant 0 : i32
    %c0_i32_1 = arith.constant 0 : i32
    return %c0_i32, %c0_i32_0 : i32, i32
  }
  func.func @transform_1(%arg0: i32) -> (i32, i32) {
    %c0_i32 = arith.constant 0 : i32
    %c0_i32_0 = arith.constant 0 : i32
    return %arg0, %c0_i32 : i32, i32
  }
  func.func @transform_2(%arg0: i32) -> (i32, i32) {
    %c0_i32 = arith.constant 0 : i32
    %c0_i32_0 = arith.constant 0 : i32
    %c0_i32_1 = arith.constant 0 : i32
    return %c0_i32, %c0_i32_0 : i32, i32
  }
  func.func @transform_3(%arg0: i32) -> (i32, i32) {
    %c0_i32 = arith.constant 0 : i32
    %c0_i32_0 = arith.constant 0 : i32
    %c0_i32_1 = arith.constant 0 : i32
    return %c0_i32, %c0_i32_0 : i32, i32
  }
  func.func @transform_4(%arg0: i32) -> (i32, i32) {
    %c0_i32 = arith.constant 0 : i32
    %c0_i32_0 = arith.constant 0 : i32
    return %arg0, %c0_i32 : i32, i32
  }
}

</mosaic_0001>

<llo_original>
// kernel: gat_forward.1
$region0: #{gat_forward.1}
  #allocation0 [shape = 'u32[]', space=smem, size = 0x4, offset = 0x4, fixed_abs, tag = 'smem constant byte address 0x4 - core index']
  #allocation1 [shape = 'u32[144,128]{1,0:T(1,128)}', space=vmem, size = 0x12000, scoped, tag = 'internal scratch']
  %s0 = inlined_call_operand.vmem [shape: f32[128,128], index: 0, kind: input, shape index: {}]
  %s1 = inlined_call_operand.vmem [shape: f32[128,128], index: 1, kind: input, shape index: {}]
  %s2 = inlined_call_operand.vmem [shape: f32[1,128], index: 2, kind: input, shape index: {}]
  %s3 = inlined_call_operand.vmem [shape: f32[1,128], index: 3, kind: input, shape index: {}]
  %s4 = inlined_call_operand.vmem [shape: f32[128,128], index: 4, kind: output, shape index: {}]
  %s5 = sld [smem:[#allocation0]]
  $region26: #{gat_forward.1} parent=0
    _
  %s7 = ssub.s32 1, %s5
  %s8 = scalar_select 0, %s7, %s5
  // Predicated region
  $region2: #{gat_forward.1} parent=0 // pred_check
    _
  $region3: #{gat_forward.1} parent=0 // pred_check_branch
    %10 = sbr.rel (0) target = $region5
  $region4: #{gat_forward.1} parent=0 // pred_region
    _
  $region5: #{gat_forward.1} parent=0 // pred_fallthru
    _
  // Predicated region
  $region6: #{gat_forward.1} parent=0 // pred_check
    _
  $region7: #{gat_forward.1} parent=0 // pred_check_branch
    %12 = sbr.rel (0) target = $region9
  $region8: #{gat_forward.1} parent=0 // pred_region
    _
  $region9: #{gat_forward.1} parent=0 // pred_fallthru
    _
  // Predicated region
  $region10: #{gat_forward.1} parent=0 // pred_check
    _
  $region11: #{gat_forward.1} parent=0 // pred_check_branch
    %14 = sbr.rel (0) target = $region13
  $region12: #{gat_forward.1} parent=0 // pred_region
    _
  $region13: #{gat_forward.1} parent=0 // pred_fallthru
    _
  // Predicated region
  $region14: #{gat_forward.1} parent=0 // pred_check
    _
  $region15: #{gat_forward.1} parent=0 // pred_check_branch
    %16 = sbr.rel (0) target = $region17
  $region16: #{gat_forward.1} parent=0 // pred_region
    _
  $region17: #{gat_forward.1} parent=0 // pred_fallthru
    _
  %v17 = vld [vmem:[%s0] sm:$0xff]
  %v18 = vld [vmem:[%s0 + $0x8] sm:$0xff]
  %v19 = vld [vmem:[%s0 + $0x10] sm:$0xff]
  %v20 = vld [vmem:[%s0 + $0x18] sm:$0xff]
  %v21 = vld [vmem:[%s0 + $0x20] sm:$0xff]
  %v22 = vld [vmem:[%s0 + $0x28] sm:$0xff]
  %v23 = vld [vmem:[%s0 + $0x30] sm:$0xff]
  %v24 = vld [vmem:[%s0 + $0x38] sm:$0xff]
  %v25 = vld [vmem:[%s0 + $0x40] sm:$0xff]
  %v26 = vld [vmem:[%s0 + $0x48] sm:$0xff]
  %v27 = vld [vmem:[%s0 + $0x50] sm:$0xff]
  %v28 = vld [vmem:[%s0 + $0x58] sm:$0xff]
  %v29 = vld [vmem:[%s0 + $0x60] sm:$0xff]
  %v30 = vld [vmem:[%s0 + $0x68] sm:$0xff]
  %v31 = vld [vmem:[%s0 + $0x70] sm:$0xff]
  %v32 = vld [vmem:[%s0 + $0x78] sm:$0xff]
  %v33 = vld [vmem:[%s2] sm:$0x1]
  %v34 = vld [vmem:[%s3] sm:$0x1]
  %s35 = smul.u32 0, 128
  %s36 = scalar_lea.vmem %s0, %s35
  %v37 = vld [vmem:[%s36] sm:$0xff]
  %v38 = vld [vmem:[%s36 + $0x8] sm:$0xff]
  %v39 = vld [vmem:[%s36 + $0x10] sm:$0xff]
  %v40 = vld [vmem:[%s36 + $0x18] sm:$0xff]
  %v41 = vld [vmem:[%s36 + $0x20] sm:$0xff]
  %v42 = vld [vmem:[%s36 + $0x28] sm:$0xff]
  %v43 = vld [vmem:[%s36 + $0x30] sm:$0xff]
  %v44 = vld [vmem:[%s36 + $0x38] sm:$0xff]
  %v45 = vld [vmem:[%s36 + $0x40] sm:$0xff]
  %v46 = vld [vmem:[%s36 + $0x48] sm:$0xff]
  %v47 = vld [vmem:[%s36 + $0x50] sm:$0xff]
  %v48 = vld [vmem:[%s36 + $0x58] sm:$0xff]
  %v49 = vld [vmem:[%s36 + $0x60] sm:$0xff]
  %v50 = vld [vmem:[%s36 + $0x68] sm:$0xff]
  %v51 = vld [vmem:[%s36 + $0x70] sm:$0xff]
  %v52 = vld [vmem:[%s36 + $0x78] sm:$0xff]
  %v54 = vlaneseq
  %v55 = vshrl.u32 %v54, 7
  %v56 = vsub.s32 0, %v55
  %v57 = vrot.slane %v33, %v56
  %v59 = vmul.f32 %v37, %v57
  %v60 = vmul.f32 %v38, %v57
  %v61 = vmul.f32 %v39, %v57
  %v62 = vmul.f32 %v40, %v57
  %v63 = vmul.f32 %v41, %v57
  %v64 = vmul.f32 %v42, %v57
  %v65 = vmul.f32 %v43, %v57
  %v66 = vmul.f32 %v44, %v57
  %v67 = vmul.f32 %v45, %v57
  %v68 = vmul.f32 %v46, %v57
  %v69 = vmul.f32 %v47, %v57
  %v70 = vmul.f32 %v48, %v57
  %v71 = vmul.f32 %v49, %v57
  %v72 = vmul.f32 %v50, %v57
  %v73 = vmul.f32 %v51, %v57
  %v74 = vmul.f32 %v52, %v57
  %75 = vadd.xlane.f32.xlu0 %v59
  %v76 = vpop.xlane.xlu0 %75
  %77 = vadd.xlane.f32.xlu0 %v60
  %v78 = vpop.xlane.xlu0 %77
  %79 = vadd.xlane.f32.xlu0 %v61
  %v80 = vpop.xlane.xlu0 %79
  %81 = vadd.xlane.f32.xlu0 %v62
  %v82 = vpop.xlane.xlu0 %81
  %83 = vadd.xlane.f32.xlu0 %v63
  %v84 = vpop.xlane.xlu0 %83
  %85 = vadd.xlane.f32.xlu0 %v64
  %v86 = vpop.xlane.xlu0 %85
  %87 = vadd.xlane.f32.xlu0 %v65
  %v88 = vpop.xlane.xlu0 %87
  %89 = vadd.xlane.f32.xlu0 %v66
  %v90 = vpop.xlane.xlu0 %89
  %91 = vadd.xlane.f32.xlu0 %v67
  %v92 = vpop.xlane.xlu0 %91
  %93 = vadd.xlane.f32.xlu0 %v68
  %v94 = vpop.xlane.xlu0 %93
  %95 = vadd.xlane.f32.xlu0 %v69
  %v96 = vpop.xlane.xlu0 %95
  %97 = vadd.xlane.f32.xlu0 %v70
  %v98 = vpop.xlane.xlu0 %97
  %99 = vadd.xlane.f32.xlu0 %v71
  %v100 = vpop.xlane.xlu0 %99
  %101 = vadd.xlane.f32.xlu0 %v72
  %v102 = vpop.xlane.xlu0 %101
  %103 = vadd.xlane.f32.xlu0 %v73
  %v104 = vpop.xlane.xlu0 %103
  %105 = vadd.xlane.f32.xlu0 %v74
  %v106 = vpop.xlane.xlu0 %105
  %107 = vmatprep.subr.mxu0 0.0
  %108 = vmatpush1.xpose.msra.mxu0 %v17
  %109 = vmatprep.subr.mxu0 0.0
  %110 = vmatpush1.xpose.msra.mxu0 %v18
  %111 = vmatprep.subr.mxu0 0.0
  %112 = vmatpush1.xpose.msra.mxu0 %v19
  %113 = vmatprep.subr.mxu0 0.0
  %114 = vmatpush1.xpose.msra.mxu0 %v20
  %115 = vmatprep.subr.mxu0 0.0
  %116 = vmatpush1.xpose.msra.mxu0 %v21
  %117 = vmatprep.subr.mxu0 0.0
  %118 = vmatpush1.xpose.msra.mxu0 %v22
  %119 = vmatprep.subr.mxu0 0.0
  %120 = vmatpush1.xpose.msra.mxu0 %v23
  %121 = vmatprep.subr.mxu0 0.0
  %122 = vmatpush1.xpose.msra.mxu0 %v24
  %123 = vmatprep.subr.mxu0 0.0
  %124 = vmatpush1.xpose.msra.mxu0 %v25
  %125 = vmatprep.subr.mxu0 0.0
  %126 = vmatpush1.xpose.msra.mxu0 %v26
  %127 = vmatprep.subr.mxu0 0.0
  %128 = vmatpush1.xpose.msra.mxu0 %v27
  %129 = vmatprep.subr.mxu0 0.0
  %130 = vmatpush1.xpose.msra.mxu0 %v28
  %131 = vmatprep.subr.mxu0 0.0
  %132 = vmatpush1.xpose.msra.mxu0 %v29
  %133 = vmatprep.subr.mxu0 0.0
  %134 = vmatpush1.xpose.msra.mxu0 %v30
  %135 = vmatprep.subr.mxu0 0.0
  %136 = vmatpush1.xpose.msra.mxu0 %v31
  %137 = vmatprep.subr.mxu0 0.0
  %138 = vmatpush1.xpose.msra.mxu0 %v32
  %139 = vmatprep.subr.mxu0 0.0
  %140 = vmatpush1.xpose.msra.mxu0 0.0
  %141 = vmatprep.subr.mxu0 0.0
  %142 = vmatpush1.xpose.msra.mxu0 0.0
  %143 = vmatprep.subr.mxu0 0.0
  %144 = vmatpush1.xpose.msra.mxu0 0.0
  %145 = vmatprep.subr.mxu0 0.0
  %146 = vmatpush1.xpose.msra.mxu0 0.0
  %147 = vmatprep.subr.mxu0 0.0
  %148 = vmatpush1.xpose.msra.mxu0 0.0
  %149 = vmatprep.subr.mxu0 0.0
  %150 = vmatpush1.xpose.msra.mxu0 0.0
  %151 = vmatprep.subr.mxu0 0.0
  %152 = vmatpush1.xpose.msra.mxu0 0.0
  %153 = vmatprep.subr.mxu0 0.0
  %154 = vmatpush1.xpose.msra.mxu0 0.0
  %155 = vmatprep.subr.mxu0 0.0
  %156 = vmatpush1.xpose.msra.mxu0 0.0
  %157 = vmatprep.subr.mxu0 0.0
  %158 = vmatpush1.xpose.msra.mxu0 0.0
  %159 = vmatprep.subr.mxu0 0.0
  %160 = vmatpush1.xpose.msra.mxu0 0.0
  %161 = vmatprep.subr.mxu0 0.0
  %162 = vmatpush1.xpose.msra.mxu0 0.0
  %163 = vmatprep.subr.mxu0 0.0
  %164 = vmatpush1.xpose.msra.mxu0 0.0
  %165 = vmatprep.subr.mxu0 0.0
  %166 = vmatpush1.xpose.msra.mxu0 0.0
  %167 = vmatprep.subr.mxu0 0.0
  %168 = vmatpush1.xpose.msra.mxu0 0.0
  %169 = vmatprep.subr.mxu0 0.0
  %170 = vmatpush1.xpose.msra.mxu0 0.0
  %171 = vmatprep.mubr.f32.mxu0 0.0
  %172 = vmatmul.mubr.f32.gmra.mrb[0].mxu0 %v34
  %v173 = vpop.f32.mrb[0].mxu0
  %v174 = vadd.f32 0.0, %v173
  %v175 = vpop.f32.mrb[0].mxu0
  %176 = vdwg.mxu0
  %v177 = vlaneseq
  %v178 = vshrl.u32 %v177, 7
  %v179 = vsub.s32 0, %v178
  %v180 = vrot.slane %v174, %v179
  %v181 = vadd.f32 %v76, %v180
  %v182 = vadd.f32 %v78, %v180
  %v183 = vadd.f32 %v80, %v180
  %v184 = vadd.f32 %v82, %v180
  %v185 = vadd.f32 %v84, %v180
  %v186 = vadd.f32 %v86, %v180
  %v187 = vadd.f32 %v88, %v180
  %v188 = vadd.f32 %v90, %v180
  %v189 = vadd.f32 %v92, %v180
  %v190 = vadd.f32 %v94, %v180
  %v191 = vadd.f32 %v96, %v180
  %v192 = vadd.f32 %v98, %v180
  %v193 = vadd.f32 %v100, %v180
  %v194 = vadd.f32 %v102, %v180
  %v195 = vadd.f32 %v104, %v180
  %v196 = vadd.f32 %v106, %v180
  %vm197 = vcmp.gt.f32.partialorder %v181, 0.0
  %vm198 = vcmp.gt.f32.partialorder %v182, 0.0
  %vm199 = vcmp.gt.f32.partialorder %v183, 0.0
  %vm200 = vcmp.gt.f32.partialorder %v184, 0.0
  %vm201 = vcmp.gt.f32.partialorder %v185, 0.0
  %vm202 = vcmp.gt.f32.partialorder %v186, 0.0
  %vm203 = vcmp.gt.f32.partialorder %v187, 0.0
  %vm204 = vcmp.gt.f32.partialorder %v188, 0.0
  %vm205 = vcmp.gt.f32.partialorder %v189, 0.0
  %vm206 = vcmp.gt.f32.partialorder %v190, 0.0
  %vm207 = vcmp.gt.f32.partialorder %v191, 0.0
  %vm208 = vcmp.gt.f32.partialorder %v192, 0.0
  %vm209 = vcmp.gt.f32.partialorder %v193, 0.0
  %vm210 = vcmp.gt.f32.partialorder %v194, 0.0
  %vm211 = vcmp.gt.f32.partialorder %v195, 0.0
  %vm212 = vcmp.gt.f32.partialorder %v196, 0.0
  %v213 = vmul.f32 %v181, 0.2
  %v214 = vmul.f32 %v182, 0.2
  %v215 = vmul.f32 %v183, 0.2
  %v216 = vmul.f32 %v184, 0.2
  %v217 = vmul.f32 %v185, 0.2
  %v218 = vmul.f32 %v186, 0.2
  %v219 = vmul.f32 %v187, 0.2
  %v220 = vmul.f32 %v188, 0.2
  %v221 = vmul.f32 %v189, 0.2
  %v222 = vmul.f32 %v190, 0.2
  %v223 = vmul.f32 %v191, 0.2
  %v224 = vmul.f32 %v192, 0.2
  %v225 = vmul.f32 %v193, 0.2
  %v226 = vmul.f32 %v194, 0.2
  %v227 = vmul.f32 %v195, 0.2
  %v228 = vmul.f32 %v196, 0.2
  %v229 = vsel %vm197, %v181, %v213
  %v230 = vsel %vm198, %v182, %v214
  %v231 = vsel %vm199, %v183, %v215
  %v232 = vsel %vm200, %v184, %v216
  %v233 = vsel %vm201, %v185, %v217
  %v234 = vsel %vm202, %v186, %v218
  %v235 = vsel %vm203, %v187, %v219
  %v236 = vsel %vm204, %v188, %v220
  %v237 = vsel %vm205, %v189, %v221
  %v238 = vsel %vm206, %v190, %v222
  %v239 = vsel %vm207, %v191, %v223
  %v240 = vsel %vm208, %v192, %v224
  %v241 = vsel %vm209, %v193, %v225
  %v242 = vsel %vm210, %v194, %v226
  %v243 = vsel %vm211, %v195, %v227
  %v244 = vsel %vm212, %v196, %v228
  %v245 = vld [vmem:[%s1] sm:$0xff]
  %v246 = vld [vmem:[%s1 + $0x8] sm:$0xff]
  %v247 = vld [vmem:[%s1 + $0x10] sm:$0xff]
  %v248 = vld [vmem:[%s1 + $0x18] sm:$0xff]
  %v249 = vld [vmem:[%s1 + $0x20] sm:$0xff]
  %v250 = vld [vmem:[%s1 + $0x28] sm:$0xff]
  %v251 = vld [vmem:[%s1 + $0x30] sm:$0xff]
  %v252 = vld [vmem:[%s1 + $0x38] sm:$0xff]
  %v253 = vld [vmem:[%s1 + $0x40] sm:$0xff]
  %v254 = vld [vmem:[%s1 + $0x48] sm:$0xff]
  %v255 = vld [vmem:[%s1 + $0x50] sm:$0xff]
  %v256 = vld [vmem:[%s1 + $0x58] sm:$0xff]
  %v257 = vld [vmem:[%s1 + $0x60] sm:$0xff]
  %v258 = vld [vmem:[%s1 + $0x68] sm:$0xff]
  %v259 = vld [vmem:[%s1 + $0x70] sm:$0xff]
  %v260 = vld [vmem:[%s1 + $0x78] sm:$0xff]
  %v261 = vadd.f32 %v229, %v245
  %v262 = vadd.f32 %v230, %v246
  %v263 = vadd.f32 %v231, %v247
  %v264 = vadd.f32 %v232, %v248
  %v265 = vadd.f32 %v233, %v249
  %v266 = vadd.f32 %v234, %v250
  %v267 = vadd.f32 %v235, %v251
  %v268 = vadd.f32 %v236, %v252
  %v269 = vadd.f32 %v237, %v253
  %v270 = vadd.f32 %v238, %v254
  %v271 = vadd.f32 %v239, %v255
  %v272 = vadd.f32 %v240, %v256
  %v273 = vadd.f32 %v241, %v257
  %v274 = vadd.f32 %v242, %v258
  %v275 = vadd.f32 %v243, %v259
  %v276 = vadd.f32 %v244, %v260
  %277 = vmax.xlane.f32.xlu0 %v261
  %v278 = vpop.xlane.xlu0 %277
  %279 = vmax.xlane.f32.xlu0 %v262
  %v280 = vpop.xlane.xlu0 %279
  %281 = vmax.xlane.f32.xlu0 %v263
  %v282 = vpop.xlane.xlu0 %281
  %283 = vmax.xlane.f32.xlu0 %v264
  %v284 = vpop.xlane.xlu0 %283
  %285 = vmax.xlane.f32.xlu0 %v265
  %v286 = vpop.xlane.xlu0 %285
  %287 = vmax.xlane.f32.xlu0 %v266
  %v288 = vpop.xlane.xlu0 %287
  %289 = vmax.xlane.f32.xlu0 %v267
  %v290 = vpop.xlane.xlu0 %289
  %291 = vmax.xlane.f32.xlu0 %v268
  %v292 = vpop.xlane.xlu0 %291
  %293 = vmax.xlane.f32.xlu0 %v269
  %v294 = vpop.xlane.xlu0 %293
  %295 = vmax.xlane.f32.xlu0 %v270
  %v296 = vpop.xlane.xlu0 %295
  %297 = vmax.xlane.f32.xlu0 %v271
  %v298 = vpop.xlane.xlu0 %297
  %299 = vmax.xlane.f32.xlu0 %v272
  %v300 = vpop.xlane.xlu0 %299
  %301 = vmax.xlane.f32.xlu0 %v273
  %v302 = vpop.xlane.xlu0 %301
  %303 = vmax.xlane.f32.xlu0 %v274
  %v304 = vpop.xlane.xlu0 %303
  %305 = vmax.xlane.f32.xlu0 %v275
  %v306 = vpop.xlane.xlu0 %305
  %307 = vmax.xlane.f32.xlu0 %v276
  %v308 = vpop.xlane.xlu0 %307
  %v309 = vsub.f32 %v261, %v278
  %v310 = vsub.f32 %v262, %v280
  %v311 = vsub.f32 %v263, %v282
  %v312 = vsub.f32 %v264, %v284
  %v313 = vsub.f32 %v265, %v286
  %v314 = vsub.f32 %v266, %v288
  %v315 = vsub.f32 %v267, %v290
  %v316 = vsub.f32 %v268, %v292
  %v317 = vsub.f32 %v269, %v294
  %v318 = vsub.f32 %v270, %v296
  %v319 = vsub.f32 %v271, %v298
  %v320 = vsub.f32 %v272, %v300
  %v321 = vsub.f32 %v273, %v302
  %v322 = vsub.f32 %v274, %v304
  %v323 = vsub.f32 %v275, %v306
  %v324 = vsub.f32 %v276, %v308
  %v325 = vmul.f32 %v309, 1.442695
  %v326 = vpow.pop %v325
  %v327 = vmul.f32 %v310, 1.442695
  %v328 = vpow.pop %v327
  %v329 = vmul.f32 %v311, 1.442695
  %v330 = vpow.pop %v329
  %v331 = vmul.f32 %v312, 1.442695
  %v332 = vpow.pop %v331
  %v333 = vmul.f32 %v313, 1.442695
  %v334 = vpow.pop %v333
  %v335 = vmul.f32 %v314, 1.442695
  %v336 = vpow.pop %v335
  %v337 = vmul.f32 %v315, 1.442695
  %v338 = vpow.pop %v337
  %v339 = vmul.f32 %v316, 1.442695
  %v340 = vpow.pop %v339
  %v341 = vmul.f32 %v317, 1.442695
  %v342 = vpow.pop %v341
  %v343 = vmul.f32 %v318, 1.442695
  %v344 = vpow.pop %v343
  %v345 = vmul.f32 %v319, 1.442695
  %v346 = vpow.pop %v345
  %v347 = vmul.f32 %v320, 1.442695
  %v348 = vpow.pop %v347
  %v349 = vmul.f32 %v321, 1.442695
  %v350 = vpow.pop %v349
  %v351 = vmul.f32 %v322, 1.442695
  %v352 = vpow.pop %v351
  %v353 = vmul.f32 %v323, 1.442695
  %v354 = vpow.pop %v353
  %v355 = vmul.f32 %v324, 1.442695
  %v356 = vpow.pop %v355
  %357 = vadd.xlane.f32.xlu0 %v326
  %v358 = vpop.xlane.xlu0 %357
  %359 = vadd.xlane.f32.xlu0 %v328
  %v360 = vpop.xlane.xlu0 %359
  %361 = vadd.xlane.f32.xlu0 %v330
  %v362 = vpop.xlane.xlu0 %361
  %363 = vadd.xlane.f32.xlu0 %v332
  %v364 = vpop.xlane.xlu0 %363
  %365 = vadd.xlane.f32.xlu0 %v334
  %v366 = vpop.xlane.xlu0 %365
  %367 = vadd.xlane.f32.xlu0 %v336
  %v368 = vpop.xlane.xlu0 %367
  %369 = vadd.xlane.f32.xlu0 %v338
  %v370 = vpop.xlane.xlu0 %369
  %371 = vadd.xlane.f32.xlu0 %v340
  %v372 = vpop.xlane.xlu0 %371
  %373 = vadd.xlane.f32.xlu0 %v342
  %v374 = vpop.xlane.xlu0 %373
  %375 = vadd.xlane.f32.xlu0 %v344
  %v376 = vpop.xlane.xlu0 %375
  %377 = vadd.xlane.f32.xlu0 %v346
  %v378 = vpop.xlane.xlu0 %377
  %379 = vadd.xlane.f32.xlu0 %v348
  %v380 = vpop.xlane.xlu0 %379
  %381 = vadd.xlane.f32.xlu0 %v350
  %v382 = vpop.xlane.xlu0 %381
  %383 = vadd.xlane.f32.xlu0 %v352
  %v384 = vpop.xlane.xlu0 %383
  %385 = vadd.xlane.f32.xlu0 %v354
  %v386 = vpop.xlane.xlu0 %385
  %387 = vadd.xlane.f32.xlu0 %v356
  %v388 = vpop.xlane.xlu0 %387
  %v389 = vrcp.pop %v358
  %v390 = vrcp.pop %v360
  %v391 = vrcp.pop %v362
  %v392 = vrcp.pop %v364
  %v393 = vrcp.pop %v366
  %v394 = vrcp.pop %v368
  %v395 = vrcp.pop %v370
  %v396 = vrcp.pop %v372
  %v397 = vrcp.pop %v374
  %v398 = vrcp.pop %v376
  %v399 = vrcp.pop %v378
  %v400 = vrcp.pop %v380
  %v401 = vrcp.pop %v382
  %v402 = vrcp.pop %v384
  %v403 = vrcp.pop %v386
  %v404 = vrcp.pop %v388
  %v405 = vmul.f32 %v326, %v389
  %v406 = vmul.f32 %v328, %v390
  %v407 = vmul.f32 %v330, %v391
  %v408 = vmul.f32 %v332, %v392
  %v409 = vmul.f32 %v334, %v393
  %v410 = vmul.f32 %v336, %v394
  %v411 = vmul.f32 %v338, %v395
  %v412 = vmul.f32 %v340, %v396
  %v413 = vmul.f32 %v342, %v397
  %v414 = vmul.f32 %v344, %v398
  %v415 = vmul.f32 %v346, %v399
  %v416 = vmul.f32 %v348, %v400
  %v417 = vmul.f32 %v350, %v401
  %v418 = vmul.f32 %v352, %v402
  %v419 = vmul.f32 %v354, %v403
  %v420 = vmul.f32 %v356, %v404
  %421 = vmatprep.subr.mxu0 0.0
  %422 = vmatpush1.msra.mxu0 %v17
  %423 = vmatprep.subr.mxu0 0.0
  %424 = vmatpush1.msra.mxu0 %v18
  %425 = vmatprep.subr.mxu0 0.0
  %426 = vmatpush1.msra.mxu0 %v19
  %427 = vmatprep.subr.mxu0 0.0
  %428 = vmatpush1.msra.mxu0 %v20
  %429 = vmatprep.subr.mxu0 0.0
  %430 = vmatpush1.msra.mxu0 %v21
  %431 = vmatprep.subr.mxu0 0.0
  %432 = vmatpush1.msra.mxu0 %v22
  %433 = vmatprep.subr.mxu0 0.0
  %434 = vmatpush1.msra.mxu0 %v23
  %435 = vmatprep.subr.mxu0 0.0
  %436 = vmatpush1.msra.mxu0 %v24
  %437 = vmatprep.subr.mxu0 0.0
  %438 = vmatpush1.msra.mxu0 %v25
  %439 = vmatprep.subr.mxu0 0.0
  %440 = vmatpush1.msra.mxu0 %v26
  %441 = vmatprep.subr.mxu0 0.0
  %442 = vmatpush1.msra.mxu0 %v27
  %443 = vmatprep.subr.mxu0 0.0
  %444 = vmatpush1.msra.mxu0 %v28
  %445 = vmatprep.subr.mxu0 0.0
  %446 = vmatpush1.msra.mxu0 %v29
  %447 = vmatprep.subr.mxu0 0.0
  %448 = vmatpush1.msra.mxu0 %v30
  %449 = vmatprep.subr.mxu0 0.0
  %450 = vmatpush1.msra.mxu0 %v31
  %451 = vmatprep.subr.mxu0 0.0
  %452 = vmatpush1.msra.mxu0 %v32
  %453 = vmatprep.subr.mxu0 0.0
  %454 = vmatpush1.msra.mxu0 0.0
  %455 = vmatprep.subr.mxu0 0.0
  %456 = vmatpush1.msra.mxu0 0.0
  %457 = vmatprep.subr.mxu0 0.0
  %458 = vmatpush1.msra.mxu0 0.0
  %459 = vmatprep.subr.mxu0 0.0
  %460 = vmatpush1.msra.mxu0 0.0
  %461 = vmatprep.subr.mxu0 0.0
  %462 = vmatpush1.msra.mxu0 0.0
  %463 = vmatprep.subr.mxu0 0.0
  %464 = vmatpush1.msra.mxu0 0.0
  %465 = vmatprep.subr.mxu0 0.0
  %466 = vmatpush1.msra.mxu0 0.0
  %467 = vmatprep.subr.mxu0 0.0
  %468 = vmatpush1.msra.mxu0 0.0
  %469 = vmatprep.subr.mxu0 0.0
  %470 = vmatpush1.msra.mxu0 0.0
  %471 = vmatprep.subr.mxu0 0.0
  %472 = vmatpush1.msra.mxu0 0.0
  %473 = vmatprep.subr.mxu0 0.0
  %474 = vmatpush1.msra.mxu0 0.0
  %475 = vmatprep.subr.mxu0 0.0
  %476 = vmatpush1.msra.mxu0 0.0
  %477 = vmatprep.subr.mxu0 0.0
  %478 = vmatpush1.msra.mxu0 0.0
  %479 = vmatprep.subr.mxu0 0.0
  %480 = vmatpush1.msra.mxu0 0.0
  %481 = vmatprep.subr.mxu0 0.0
  %482 = vmatpush1.msra.mxu0 0.0
  %483 = vmatprep.subr.mxu0 0.0
  %484 = vmatpush1.msra.mxu0 0.0
  %485 = vmatprep.mubr.f32.mxu0 0.0
  %486 = vmatmul.mubr.f32.gmra.mrb[0].mxu0 %v405
  %v487 = vpop.f32.mrb[0].mxu0
  %v488 = vadd.f32 0.0, %v487
  %v489 = vpop.f32.mrb[0].mxu0
  %490 = vmatprep.mubr.f32.mxu0 0.0
  %491 = vmatmul.mubr.f32.gmra.mrb[0].mxu0 %v406
  %v492 = vpop.f32.mrb[0].mxu0
  %v493 = vadd.f32 0.0, %v492
  %v494 = vpop.f32.mrb[0].mxu0
  %495 = vmatprep.mubr.f32.mxu0 0.0
  %496 = vmatmul.mubr.f32.gmra.mrb[0].mxu0 %v407
  %v497 = vpop.f32.mrb[0].mxu0
  %v498 = vadd.f32 0.0, %v497
  %v499 = vpop.f32.mrb[0].mxu0
  %500 = vmatprep.mubr.f32.mxu0 0.0
  %501 = vmatmul.mubr.f32.gmra.mrb[0].mxu0 %v408
  %v502 = vpop.f32.mrb[0].mxu0
  %v503 = vadd.f32 0.0, %v502
  %v504 = vpop.f32.mrb[0].mxu0
  %505 = vmatprep.mubr.f32.mxu0 0.0
  %506 = vmatmul.mubr.f32.gmra.mrb[0].mxu0 %v409
  %v507 = vpop.f32.mrb[0].mxu0
  %v508 = vadd.f32 0.0, %v507
  %v509 = vpop.f32.mrb[0].mxu0
  %510 = vmatprep.mubr.f32.mxu0 0.0
  %511 = vmatmul.mubr.f32.gmra.mrb[0].mxu0 %v410
  %v512 = vpop.f32.mrb[0].mxu0
  %v513 = vadd.f32 0.0, %v512
  %v514 = vpop.f32.mrb[0].mxu0
  %515 = vmatprep.mubr.f32.mxu0 0.0
  %516 = vmatmul.mubr.f32.gmra.mrb[0].mxu0 %v411
  %v517 = vpop.f32.mrb[0].mxu0
  %v518 = vadd.f32 0.0, %v517
  %v519 = vpop.f32.mrb[0].mxu0
  %520 = vmatprep.mubr.f32.mxu0 0.0
  %521 = vmatmul.mubr.f32.gmra.mrb[0].mxu0 %v412
  %v522 = vpop.f32.mrb[0].mxu0
  %v523 = vadd.f32 0.0, %v522
  %v524 = vpop.f32.mrb[0].mxu0
  %525 = vmatprep.mubr.f32.mxu0 0.0
  %526 = vmatmul.mubr.f32.gmra.mrb[0].mxu0 %v413
  %v527 = vpop.f32.mrb[0].mxu0
  %v528 = vadd.f32 0.0, %v527
  %v529 = vpop.f32.mrb[0].mxu0
  %530 = vmatprep.mubr.f32.mxu0 0.0
  %531 = vmatmul.mubr.f32.gmra.mrb[0].mxu0 %v414
  %v532 = vpop.f32.mrb[0].mxu0
  %v533 = vadd.f32 0.0, %v532
  %v534 = vpop.f32.mrb[0].mxu0
  %535 = vmatprep.mubr.f32.mxu0 0.0
  %536 = vmatmul.mubr.f32.gmra.mrb[0].mxu0 %v415
  %v537 = vpop.f32.mrb[0].mxu0
  %v538 = vadd.f32 0.0, %v537
  %v539 = vpop.f32.mrb[0].mxu0
  %540 = vmatprep.mubr.f32.mxu0 0.0
  %541 = vmatmul.mubr.f32.gmra.mrb[0].mxu0 %v416
  %v542 = vpop.f32.mrb[0].mxu0
  %v543 = vadd.f32 0.0, %v542
  %v544 = vpop.f32.mrb[0].mxu0
  %545 = vmatprep.mubr.f32.mxu0 0.0
  %546 = vmatmul.mubr.f32.gmra.mrb[0].mxu0 %v417
  %v547 = vpop.f32.mrb[0].mxu0
  %v548 = vadd.f32 0.0, %v547
  %v549 = vpop.f32.mrb[0].mxu0
  %550 = vmatprep.mubr.f32.mxu0 0.0
  %551 = vmatmul.mubr.f32.gmra.mrb[0].mxu0 %v418
  %v552 = vpop.f32.mrb[0].mxu0
  %v553 = vadd.f32 0.0, %v552
  %v554 = vpop.f32.mrb[0].mxu0
  %555 = vmatprep.mubr.f32.mxu0 0.0
  %556 = vmatmul.mubr.f32.gmra.mrb[0].mxu0 %v419
  %v557 = vpop.f32.mrb[0].mxu0
  %v558 = vadd.f32 0.0, %v557
  %v559 = vpop.f32.mrb[0].mxu0
  %560 = vmatprep.mubr.f32.mxu0 0.0
  %561 = vmatmul.mubr.f32.gmra.mrb[0].mxu0 %v420
  %v562 = vpop.f32.mrb[0].mxu0
  %v563 = vadd.f32 0.0, %v562
  %v564 = vpop.f32.mrb[0].mxu0
  %565 = vdwg.mxu0
  %566 = vst [vmem:[%s4] sm:$0xff] %v488
  %567 = vst [vmem:[%s4 + $0x8] sm:$0xff] %v493
  %568 = vst [vmem:[%s4 + $0x10] sm:$0xff] %v498
  %569 = vst [vmem:[%s4 + $0x18] sm:$0xff] %v503
  %570 = vst [vmem:[%s4 + $0x20] sm:$0xff] %v508
  %571 = vst [vmem:[%s4 + $0x28] sm:$0xff] %v513
  %572 = vst [vmem:[%s4 + $0x30] sm:$0xff] %v518
  %573 = vst [vmem:[%s4 + $0x38] sm:$0xff] %v523
  %574 = vst [vmem:[%s4 + $0x40] sm:$0xff] %v528
  %575 = vst [vmem:[%s4 + $0x48] sm:$0xff] %v533
  %576 = vst [vmem:[%s4 + $0x50] sm:$0xff] %v538
  %577 = vst [vmem:[%s4 + $0x58] sm:$0xff] %v543
  %578 = vst [vmem:[%s4 + $0x60] sm:$0xff] %v548
  %579 = vst [vmem:[%s4 + $0x68] sm:$0xff] %v553
  %580 = vst [vmem:[%s4 + $0x70] sm:$0xff] %v558
  %581 = vst [vmem:[%s4 + $0x78] sm:$0xff] %v563
  // Predicated region
  $region18: #{gat_forward.1} parent=0 // pred_check
    _
  $region19: #{gat_forward.1} parent=0 // pred_check_branch
    %583 = sbr.rel (0) target = $region21
  $region20: #{gat_forward.1} parent=0 // pred_region
    _
  $region21: #{gat_forward.1} parent=0 // pred_fallthru
    _
  // Predicated region
  $region22: #{gat_forward.1} parent=0 // pred_check
    _
  $region23: #{gat_forward.1} parent=0 // pred_check_branch
    %585 = sbr.rel (0) target = $region25
  $region24: #{gat_forward.1} parent=0 // pred_region
    _
  $region25: #{gat_forward.1} parent=0 // pred_fallthru
    _

</llo_original>
